<compile_context>
chip_gen: v5e
topology: v5e:2x2
jax: 0.10.0
libtpu: 0.0.40
codegen_flags: <defaults>
</compile_context>

<pallas_src>
import math
from functools import partial

import jax
import jax.numpy as jnp
from jax.experimental import pallas as pl
from jax.experimental.pallas import tpu as pltpu


def _round_up(x, m):
    return ((x + m - 1) // m) * m


def _choose_tiling(batch, tile_b_req):
    """Pick (tile_b, padded_batch) with padded_batch % tile_b == 0.

    Batch tiles are either 128-lane aligned (multi-tile grids, >=2 steps so v7x's two
    TensorCores both get work) or a single tile spanning the whole 8-padded batch
    (tiny batches, where padding to 128 lanes would only waste work).
    """
    b8 = _round_up(batch, 8)
    if b8 < 256:
        return b8, b8                       # one block == full (8-padded) batch
    b128 = _round_up(batch, 128)
    tile_b = max(128, (int(tile_b_req) // 128) * 128)
    tile_b = max(128, min(tile_b, (b128 // 2 // 128) * 128))   # guarantee >= 2 tiles
    num_tiles = -(-b128 // tile_b)
    return tile_b, num_tiles * tile_b


def _critic_kernel(xt_ref, w1t_ref, b1_ref, w2t_ref, b2_ref, wq_ref, bq_ref, o_ref,
                   *, precision):
    mm = w2t_ref.dtype
    # Layer 1 (hstack already packed in the wrapper): (H, D_in) @ (D_in, TB)
    h1 = jnp.dot(w1t_ref[...], xt_ref[...],
                 preferred_element_type=jnp.float32, precision=precision)
    h1 = jnp.maximum(h1 + b1_ref[...], 0.0)                 # f32 bias + ReLU on VPU
    # Layer 2: (H, H) @ (H, TB)
    h2 = jnp.dot(w2t_ref[...], h1.astype(mm),
                 preferred_element_type=jnp.float32, precision=precision)
    h2 = jnp.maximum(h2 + b2_ref[...], 0.0)
    # Q head: (1, H) @ (H, TB) -> lane-dense (1, TB) row.
    q = jnp.dot(wq_ref[...], h2.astype(mm),
                preferred_element_type=jnp.float32, precision=precision)
    o_ref[...] = (q + bq_ref[0, 0]).astype(o_ref.dtype)


def critic_forward(state, action, params, *, tile_b=1024,
                   matmul_dtype=jnp.bfloat16, precision=None):
    """Runs the Critic MLP as a batch-tiled Pallas kernel.

    state:  (B, state_dim)  float32
    action: (B, action_dim) float32
    Returns (B, 1) float32 Q values.
    """
    w1, b1, w2, b2, wq, bq = params
    B, state_dim = state.shape
    action_dim = action.shape[1]
    in_dim = state_dim + action_dim
    density = w2.shape[0]
    assert w1.shape == (in_dim, density)

    mm = matmul_dtype
    # One-time (per call, outside the grid loop) weight layout + dtype preparation:
    # transposed for the lane-dense orientation, cast to the MXU input dtype here so
    # the kernel never re-casts VMEM-resident weights on every grid step.
    w1t = w1.T.astype(mm)                               # (H, D_in)
    w2t = w2.T.astype(mm)                               # (H, H)
    wqr = wq.reshape(1, density).astype(mm)             # (1, H)
    b1c = b1.reshape(density, 1).astype(jnp.float32)    # (H, 1) f32, lane-broadcast
    b2c = b2.reshape(density, 1).astype(jnp.float32)
    bqs = bq.reshape(1, 1).astype(jnp.float32)          # scalar -> SMEM

    tile_b, b_pad = _choose_tiling(B, tile_b)

    # Pre-pack hstack(state, action), pad the batch, transpose so batch is the lane
    # (last) axis: streamed input, activations and the Q output are all lane-dense.
    x = jnp.concatenate([state.astype(jnp.float32), action.astype(jnp.float32)], axis=1)
    if b_pad != B:
        x = jnp.pad(x, ((0, b_pad - B), (0, 0)))
    xt = x.T.astype(mm)                                  # (D_in, B_pad)

    grid = (b_pad // tile_b,)
    kernel = partial(_critic_kernel, precision=precision)
    out = pl.pallas_call(
        kernel,
        out_shape=jax.ShapeDtypeStruct((1, b_pad), jnp.float32),
        grid=grid,
        in_specs=[
            pl.BlockSpec((in_dim, tile_b), lambda i: (0, i)),   # streamed input tile
            pl.BlockSpec(w1t.shape, lambda i: (0, 0)),          # VMEM-resident weights
            pl.BlockSpec(b1c.shape, lambda i: (0, 0)),
            pl.BlockSpec(w2t.shape, lambda i: (0, 0)),
            pl.BlockSpec(b2c.shape, lambda i: (0, 0)),
            pl.BlockSpec(wqr.shape, lambda i: (0, 0)),
            pl.BlockSpec(memory_space=pltpu.MemorySpace.SMEM),  # scalar Q bias
        ],
        out_specs=pl.BlockSpec((1, tile_b), lambda i: (0, i)),  # lane-dense output row
        compiler_params=pltpu.CompilerParams(
            dimension_semantics=("parallel",),   # v7x: shard batch tiles across 2 TCs
            vmem_limit_bytes=32 << 20,           # > v5e 16 MiB default, < v7x 64 MiB
        ),
    )(xt, w1t, b1c, w2t, b2c, wqr, bqs)
    # Padded batch rows carry garbage (bias+ReLU of zeros); slice them off here.
    return out[0, :B].reshape(B, 1)


def init_critic_params(key, input_dim, density):
    """Deterministic init mimicking PyTorch nn.Linear (uniform +-1/sqrt(fan_in)).

    Weights stored as (in_features, out_features); biases as (1, out_features).
    """
    keys = jax.random.split(key, 6)

    def linear(kw, kb, fan_in, fan_out):
        bound = 1.0 / math.sqrt(fan_in)
        w = jax.random.uniform(kw, (fan_in, fan_out), jnp.float32, -bound, bound)
        b = jax.random.uniform(kb, (1, fan_out), jnp.float32, -bound, bound)
        return w, b

    w1, b1 = linear(keys[0], keys[1], input_dim, density)
    w2, b2 = linear(keys[2], keys[3], density, density)
    wq, bq = linear(keys[4], keys[5], density, 1)
    return (w1, b1, w2, b2, wq, bq)


def critic_ref(state, action, params):
    """Pure-JAX reference of the same forward pass (for verification)."""
    w1, b1, w2, b2, wq, bq = params
    x = jnp.concatenate([state, action], axis=1)
    h1 = jnp.maximum(x @ w1 + b1, 0.0)
    h2 = jnp.maximum(h1 @ w2 + b2, 0.0)
    return h2 @ wq + bq


# TODO(synk): the Adam optimizer / weight_decay and save_model/load_model checkpointing
# from the PyTorch module are training/IO-side and are not part of the forward kernel.

if __name__ == "__main__":
    key = jax.random.PRNGKey(0)
    k_state, k_action, k_params = jax.random.split(key, 3)

    batch = 8
    state_dim = 12
    action_dim = 4
    input_dim = state_dim + action_dim   # Critic(input_dim=16, ...)
    density = 32                         # small stand-in for density=512

    state = jax.random.normal(k_state, (batch, state_dim), jnp.float32)
    action = jax.random.normal(k_action, (batch, action_dim), jnp.float32)
    params = init_critic_params(k_params, input_dim, density)

    q_ref = critic_ref(state, action, params)

    # f32 MXU-input path (numerics closest to the float32 PyTorch module).
    q_f32 = jax.block_until_ready(
        critic_forward(state, action, params, matmul_dtype=jnp.float32))
    assert q_f32.shape == (batch, 1), q_f32.shape
    assert jnp.allclose(q_f32, q_ref, atol=1e-5, rtol=1e-5), (q_f32, q_ref)

    # Default bf16 MXU-input path (f32 accumulation / bias / ReLU), throughput mode.
    q_bf16 = jax.block_until_ready(critic_forward(state, action, params))
    assert q_bf16.shape == (batch, 1), q_bf16.shape
    assert jnp.allclose(q_bf16, q_ref, atol=1e-1, rtol=1e-1), (q_bf16, q_ref)

    # Ragged tiny batch -> single-tile grid spanning the 8-padded batch.
    b2 = 10
    s2 = jax.random.normal(jax.random.PRNGKey(1), (b2, state_dim), jnp.float32)
    a2 = jax.random.normal(jax.random.PRNGKey(2), (b2, action_dim), jnp.float32)
    q2 = jax.block_until_ready(
        critic_forward(s2, a2, params, matmul_dtype=jnp.float32))
    assert q2.shape == (b2, 1), q2.shape
    assert jnp.allclose(q2, critic_ref(s2, a2, params), atol=1e-5, rtol=1e-5)

    # Larger ragged batch -> multi-tile, 128-lane-aligned grid (>=2 steps for v7x).
    b3 = 300
    s3 = jax.random.normal(jax.random.PRNGKey(3), (b3, state_dim), jnp.float32)
    a3 = jax.random.normal(jax.random.PRNGKey(4), (b3, action_dim), jnp.float32)
    q3 = jax.block_until_ready(
        critic_forward(s3, a3, params, tile_b=128, matmul_dtype=jnp.float32))
    assert q3.shape == (b3, 1), q3.shape
    assert jnp.allclose(q3, critic_ref(s3, a3, params), atol=1e-5, rtol=1e-5)

    print("KERNEL_OK")
</pallas_src>

<mosaic_0001>
module attributes {stable_mosaic.version = 11 : i64} {
  func.func @_critic_kernel(%arg0: i32, %arg1: memref<16x8xf32, #tpu.memory_space<vmem>>, %arg2: memref<32x16xf32, #tpu.memory_space<vmem>>, %arg3: memref<32x1xf32, #tpu.memory_space<vmem>>, %arg4: memref<32x32xf32, #tpu.memory_space<vmem>>, %arg5: memref<32x1xf32, #tpu.memory_space<vmem>>, %arg6: memref<1x32xf32, #tpu.memory_space<vmem>>, %arg7: memref<1x1xf32, #tpu.memory_space<smem>>, %arg8: memref<1x8xf32, #tpu.memory_space<vmem>>) attributes {dimension_semantics = [#tpu.dimension_semantics<parallel>], iteration_bounds = array<i64: 1>, scalar_prefetch = 0 : i64, scratch_operands = 0 : i64, tpu.core_type = #tpu.core_type<tc>, window_params = [{transform_indices = @transform_0, window_bounds = array<i64: 16, 8>}, {pipeline_mode = #tpu.pipeline_mode<synchronous>, transform_indices = @transform_1, window_bounds = array<i64: 32, 16>}, {pipeline_mode = #tpu.pipeline_mode<synchronous>, transform_indices = @transform_2, window_bounds = array<i64: 32, 1>}, {pipeline_mode = #tpu.pipeline_mode<synchronous>, transform_indices = @transform_3, window_bounds = array<i64: 32, 32>}, {pipeline_mode = #tpu.pipeline_mode<synchronous>, transform_indices = @transform_4, window_bounds = array<i64: 32, 1>}, {pipeline_mode = #tpu.pipeline_mode<synchronous>, transform_indices = @transform_5, window_bounds = array<i64: 1, 32>}, {transform_indices = @transform_6, window_bounds = array<i64: 1, 1>}, {transform_indices = @transform_7, window_bounds = array<i64: 1, 8>}]} {
    %c0 = arith.constant 0 : index
    %c0_0 = arith.constant 0 : index
    %0 = vector.load %arg2[%c0, %c0_0] : memref<32x16xf32, #tpu.memory_space<vmem>>, vector<32x16xf32>
    %c0_1 = arith.constant 0 : index
    %c0_2 = arith.constant 0 : index
    %1 = vector.load %arg1[%c0_1, %c0_2] : memref<16x8xf32, #tpu.memory_space<vmem>>, vector<16x8xf32>
    %cst = arith.constant dense<0.000000e+00> : vector<32x8xf32>
    %2 = tpu.matmul %0, %1, %cst {dimension_numbers = #tpu.dot_dimension_numbers<[1], [0], [0], [1], [0, 0, 1, 1], [], []>} : vector<32x16xf32>, vector<16x8xf32>, vector<32x8xf32> -> vector<32x8xf32>
    %c0_3 = arith.constant 0 : index
    %c0_4 = arith.constant 0 : index
    %3 = vector.load %arg3[%c0_3, %c0_4] : memref<32x1xf32, #tpu.memory_space<vmem>>, vector<32x1xf32>
    %4 = vector.broadcast %3 : vector<32x1xf32> to vector<32x8xf32>
    %5 = arith.addf %2, %4 : vector<32x8xf32>
    %cst_5 = arith.constant 0.000000e+00 : f32
    %6 = vector.broadcast %cst_5 : f32 to vector<32x8xf32>
    %7 = arith.maximumf %5, %6 : vector<32x8xf32>
    %c0_6 = arith.constant 0 : index
    %c0_7 = arith.constant 0 : index
    %8 = vector.load %arg4[%c0_6, %c0_7] : memref<32x32xf32, #tpu.memory_space<vmem>>, vector<32x32xf32>
    %cst_8 = arith.constant dense<0.000000e+00> : vector<32x8xf32>
    %9 = tpu.matmul %8, %7, %cst_8 {dimension_numbers = #tpu.dot_dimension_numbers<[1], [0], [0], [1], [0, 0, 1, 1], [], []>} : vector<32x32xf32>, vector<32x8xf32>, vector<32x8xf32> -> vector<32x8xf32>
    %c0_9 = arith.constant 0 : index
    %c0_10 = arith.constant 0 : index
    %10 = vector.load %arg5[%c0_9, %c0_10] : memref<32x1xf32, #tpu.memory_space<vmem>>, vector<32x1xf32>
    %11 = vector.broadcast %10 : vector<32x1xf32> to vector<32x8xf32>
    %12 = arith.addf %9, %11 : vector<32x8xf32>
    %cst_11 = arith.constant 0.000000e+00 : f32
    %13 = vector.broadcast %cst_11 : f32 to vector<32x8xf32>
    %14 = arith.maximumf %12, %13 : vector<32x8xf32>
    %c0_12 = arith.constant 0 : index
    %c0_13 = arith.constant 0 : index
    %15 = vector.load %arg6[%c0_12, %c0_13] : memref<1x32xf32, #tpu.memory_space<vmem>>, vector<1x32xf32>
    %cst_14 = arith.constant dense<0.000000e+00> : vector<1x8xf32>
    %16 = tpu.matmul %15, %14, %cst_14 {dimension_numbers = #tpu.dot_dimension_numbers<[1], [0], [0], [1], [0, 0, 1, 1], [], []>} : vector<1x32xf32>, vector<32x8xf32>, vector<1x8xf32> -> vector<1x8xf32>
    %c0_15 = arith.constant 0 : index
    %c0_16 = arith.constant 0 : index
    %17 = memref.load %arg7[%c0_15, %c0_16] : memref<1x1xf32, #tpu.memory_space<smem>>
    %18 = vector.broadcast %17 : f32 to vector<1x8xf32>
    %19 = arith.addf %16, %18 : vector<1x8xf32>
    %c0_17 = arith.constant 0 : index
    %c0_18 = arith.constant 0 : index
    %20 = vector.load %arg8[%c0_17, %c0_18] : memref<1x8xf32, #tpu.memory_space<vmem>>, vector<1x8xf32>
    tpu.vector_store %arg8[%c0_17, %c0_18], %19 {strides = array<i32>} : memref<1x8xf32, #tpu.memory_space<vmem>>, vector<1x8xf32>,
    return
  }
  func.func @transform_0(%arg0: i32) -> (i32, i32) {
    %c0_i32 = arith.constant 0 : i32
    %c0_i32_0 = arith.constant 0 : i32
    return %c0_i32, %arg0 : i32, i32
  }
  func.func @transform_1(%arg0: i32) -> (i32, i32) {
    %c0_i32 = arith.constant 0 : i32
    %c0_i32_0 = arith.constant 0 : i32
    %c0_i32_1 = arith.constant 0 : i32
    return %c0_i32, %c0_i32_0 : i32, i32
  }
  func.func @transform_2(%arg0: i32) -> (i32, i32) {
    %c0_i32 = arith.constant 0 : i32
    %c0_i32_0 = arith.constant 0 : i32
    %c0_i32_1 = arith.constant 0 : i32
    return %c0_i32, %c0_i32_0 : i32, i32
  }
  func.func @transform_3(%arg0: i32) -> (i32, i32) {
    %c0_i32 = arith.constant 0 : i32
    %c0_i32_0 = arith.constant 0 : i32
    %c0_i32_1 = arith.constant 0 : i32
    return %c0_i32, %c0_i32_0 : i32, i32
  }
  func.func @transform_4(%arg0: i32) -> (i32, i32) {
    %c0_i32 = arith.constant 0 : i32
    %c0_i32_0 = arith.constant 0 : i32
    %c0_i32_1 = arith.constant 0 : i32
    return %c0_i32, %c0_i32_0 : i32, i32
  }
  func.func @transform_5(%arg0: i32) -> (i32, i32) {
    %c0_i32 = arith.constant 0 : i32
    %c0_i32_0 = arith.constant 0 : i32
    %c0_i32_1 = arith.constant 0 : i32
    return %c0_i32, %c0_i32_0 : i32, i32
  }
  func.func @transform_6(%arg0: i32) -> (i32, i32) {
    %c0_i32 = arith.constant 0 : i32
    %c0_i32_0 = arith.constant 0 : i32
    %c0_i32_1 = arith.constant 0 : i32
    return %c0_i32, %c0_i32_0 : i32, i32
  }
  func.func @transform_7(%arg0: i32) -> (i32, i32) {
    %c0_i32 = arith.constant 0 : i32
    %c0_i32_0 = arith.constant 0 : i32
    return %c0_i32, %arg0 : i32, i32
  }
}

</mosaic_0001>

<llo_original>
// kernel: tpu_custom_call.1
$region0: #{tpu_custom_call.1}
  #allocation0 [shape = 'u32[]', space=smem, size = 0x4, offset = 0x4, fixed_abs, tag = 'smem constant byte address 0x4 - core index']
  #allocation1 [shape = 'u32[72,128]{1,0:T(1,128)}', space=vmem, size = 0x9000, scoped, tag = 'internal scratch']
  #allocation2 [shape = 'f32[1,1]{1,0:T(1,128)S(6)}', space=smem, size = 0x200, scoped, tag = 'scoped memory for tpu_custom_call.1']
  %s0 = inlined_call_operand.vmem [shape: f32[16,8], index: 0, kind: input, shape index: {}]
  %s1 = inlined_call_operand.vmem [shape: f32[32,16], index: 1, kind: input, shape index: {}]
  %s2 = inlined_call_operand.vmem [shape: f32[32,1], index: 2, kind: input, shape index: {}]
  %s3 = inlined_call_operand.vmem [shape: f32[32,32], index: 3, kind: input, shape index: {}]
  %s4 = inlined_call_operand.vmem [shape: f32[32,1], index: 4, kind: input, shape index: {}]
  %s5 = inlined_call_operand.vmem [shape: f32[1,32], index: 5, kind: input, shape index: {}]
  %s6 = inlined_call_operand.<no memory space> [shape: f32[1,1], index: 6, kind: input, shape index: {}]
  %s7 = inlined_call_operand.hbm [shape: f32[1,8], index: 7, kind: output, shape index: {}]
  %s8 = sld [smem:[#allocation0]]
  $region38: #{tpu_custom_call.1} parent=0
    _
  %s10 = ssub.s32 1, %s8
  %s11 = scalar_select 0, %s10, %s8
  %12 = sst [smem:[#allocation2]] %s6
  $region1: #{tpu_custom_call.1} parent=0
    #allocation3 [shape = 'u8[512]{0}', space=vmem, size = 0x400, scoped, tag = 'output window, operand 0, single buffered']
    #allocation4 [shape = 's32[1]{0}', space=sflag, size = 0x4, scoped, tag = 'scoped memory for tpu_custom_call.1']
    %13 = vsyncpa [#allocation4], 0
    // Predicated region
    $region2: #{tpu_custom_call.1} parent=1 // pred_check
      _
    $region3: #{tpu_custom_call.1} parent=1 // pred_check_branch
      %15 = sbr.rel (0) target = $region5
    $region4: #{tpu_custom_call.1} parent=1 // pred_region
      _
    $region5: #{tpu_custom_call.1} parent=1 // pred_fallthru
      _
    // Predicated region
    $region6: #{tpu_custom_call.1} parent=1 // pred_check
      _
    $region7: #{tpu_custom_call.1} parent=1 // pred_check_branch
      %17 = sbr.rel (0) target = $region9
    $region8: #{tpu_custom_call.1} parent=1 // pred_region
      _
    $region9: #{tpu_custom_call.1} parent=1 // pred_fallthru
      _
    // Predicated region
    $region10: #{tpu_custom_call.1} parent=1 // pred_check
      _
    $region11: #{tpu_custom_call.1} parent=1 // pred_check_branch
      %19 = sbr.rel (0) target = $region13
    $region12: #{tpu_custom_call.1} parent=1 // pred_region
      _
    $region13: #{tpu_custom_call.1} parent=1 // pred_fallthru
      _
    // Predicated region
    $region14: #{tpu_custom_call.1} parent=1 // pred_check
      _
    $region15: #{tpu_custom_call.1} parent=1 // pred_check_branch
      %21 = sbr.rel (0) target = $region17
    $region16: #{tpu_custom_call.1} parent=1 // pred_region
      _
    $region17: #{tpu_custom_call.1} parent=1 // pred_fallthru
      _
    // Predicated region
    $region18: #{tpu_custom_call.1} parent=1 // pred_check
      _
    $region19: #{tpu_custom_call.1} parent=1 // pred_check_branch
      %23 = sbr.rel (0) target = $region21
    $region20: #{tpu_custom_call.1} parent=1 // pred_region
      _
    $region21: #{tpu_custom_call.1} parent=1 // pred_fallthru
      _
    // Predicated region
    $region22: #{tpu_custom_call.1} parent=1 // pred_check
      _
    $region23: #{tpu_custom_call.1} parent=1 // pred_check_branch
      %25 = sbr.rel (0) target = $region25
    $region24: #{tpu_custom_call.1} parent=1 // pred_region
      _
    $region25: #{tpu_custom_call.1} parent=1 // pred_fallthru
      _
    // Predicated region
    $region26: #{tpu_custom_call.1} parent=1 // pred_check
      _
    $region27: #{tpu_custom_call.1} parent=1 // pred_check_branch
      %27 = sbr.rel (0) target = $region29
    $region28: #{tpu_custom_call.1} parent=1 // pred_region
      _
    $region29: #{tpu_custom_call.1} parent=1 // pred_fallthru
      _
    %v28 = vld [vmem:[%s1] sm:$0xff]
    %v29 = vld [vmem:[%s1 + $0x8] sm:$0xff]
    %v30 = vld [vmem:[%s1 + $0x10] sm:$0xff]
    %v31 = vld [vmem:[%s1 + $0x18] sm:$0xff]
    %v32 = vld [vmem:[%s0] sm:$0xff]
    %v33 = vld [vmem:[%s0 + $0x8] sm:$0xff]
    %v34 = vld [vmem:[%s2] sm:$0xff]
    %v35 = vld [vmem:[%s2 + $0x8] sm:$0xff]
    %v36 = vld [vmem:[%s2 + $0x10] sm:$0xff]
    %v37 = vld [vmem:[%s2 + $0x18] sm:$0xff]
    %39 = vset.pattern.permute.xlu0 0
    %40 = vperm.xlu0 %39, %v34
    %v41 = vpop.permute.xlu0 %40
    %44 = vset.pattern.permute.xlu0 0
    %45 = vperm.xlu0 %44, %v35
    %v46 = vpop.permute.xlu0 %45
    %49 = vset.pattern.permute.xlu0 0
    %50 = vperm.xlu0 %49, %v36
    %v51 = vpop.permute.xlu0 %50
    %54 = vset.pattern.permute.xlu0 0
    %55 = vperm.xlu0 %54, %v37
    %v56 = vpop.permute.xlu0 %55
    %vm58 = vcmask 130048
    %v60 = vsel %vm58, %v28, 0
    %v63 = vsel %vm58, %v29, 0
    %v66 = vsel %vm58, %v30, 0
    %v69 = vsel %vm58, %v31, 0
    %71 = vmatpush.msra.mxu0 0.0
    %72 = vmatpush.msra.mxu0 0.0
    %73 = vmatpush.msra.mxu0 0.0
    %74 = vmatpush.msra.mxu0 0.0
    %75 = vmatpush.msra.mxu0 0.0
    %76 = vmatpush.msra.mxu0 0.0
    %77 = vmatpush.msra.mxu0 0.0
    %78 = vmatpush.msra.mxu0 0.0
    %79 = vmatpush.msra.mxu0 0.0
    %80 = vmatpush.msra.mxu0 0.0
    %81 = vmatpush.msra.mxu0 0.0
    %82 = vmatpush.msra.mxu0 0.0
    %83 = vmatpush.msra.mxu0 0.0
    %84 = vmatpush.msra.mxu0 0.0
    %85 = vmatpush.msra.mxu0 %v33
    %86 = vmatpush.msra.mxu0 %v32
    %87 = vmatmul.f32.gmra.mxu0 %v60
    %v88 = vpop.f32.mrf.mxu0
    %v89 = vadd.f32 %v41, %v88
    %90 = vmatmul.f32.gmra.mxu0 %v63
    %v91 = vpop.f32.mrf.mxu0
    %v92 = vadd.f32 %v46, %v91
    %93 = vmatmul.f32.gmra.mxu0 %v66
    %v94 = vpop.f32.mrf.mxu0
    %v95 = vadd.f32 %v51, %v94
    %96 = vmatmul.f32.gmra.mxu0 %v69
    %v97 = vpop.f32.mrf.mxu0
    %v98 = vadd.f32 %v56, %v97
    %99 = vdwg.mxu0
    %v100 = vmax.f32 %v89, 0.0
    %v101 = vmax.f32 %v92, 0.0
    %v102 = vmax.f32 %v95, 0.0
    %v103 = vmax.f32 %v98, 0.0
    %v104 = vld [vmem:[%s3] sm:$0xff]
    %v105 = vld [vmem:[%s3 + $0x8] sm:$0xff]
    %v106 = vld [vmem:[%s3 + $0x10] sm:$0xff]
    %v107 = vld [vmem:[%s3 + $0x18] sm:$0xff]
    %v108 = vld [vmem:[%s4] sm:$0xff]
    %v109 = vld [vmem:[%s4 + $0x8] sm:$0xff]
    %v110 = vld [vmem:[%s4 + $0x10] sm:$0xff]
    %v111 = vld [vmem:[%s4 + $0x18] sm:$0xff]
    %113 = vset.pattern.permute.xlu0 0
    %114 = vperm.xlu0 %113, %v108
    %v115 = vpop.permute.xlu0 %114
    %118 = vset.pattern.permute.xlu0 0
    %119 = vperm.xlu0 %118, %v109
    %v120 = vpop.permute.xlu0 %119
    %123 = vset.pattern.permute.xlu0 0
    %124 = vperm.xlu0 %123, %v110
    %v125 = vpop.permute.xlu0 %124
    %128 = vset.pattern.permute.xlu0 0
    %129 = vperm.xlu0 %128, %v111
    %v130 = vpop.permute.xlu0 %129
    %vm132 = vcmask 261120
    %v134 = vsel %vm132, %v104, 0
    %v137 = vsel %vm132, %v105, 0
    %v140 = vsel %vm132, %v106, 0
    %v143 = vsel %vm132, %v107, 0
    %145 = vmatpush.msra.mxu0 0.0
    %146 = vmatpush.msra.mxu0 0.0
    %147 = vmatpush.msra.mxu0 0.0
    %148 = vmatpush.msra.mxu0 0.0
    %149 = vmatpush.msra.mxu0 0.0
    %150 = vmatpush.msra.mxu0 0.0
    %151 = vmatpush.msra.mxu0 0.0
    %152 = vmatpush.msra.mxu0 0.0
    %153 = vmatpush.msra.mxu0 0.0
    %154 = vmatpush.msra.mxu0 0.0
    %155 = vmatpush.msra.mxu0 0.0
    %156 = vmatpush.msra.mxu0 0.0
    %157 = vmatpush.msra.mxu0 %v103
    %158 = vmatpush.msra.mxu0 %v102
    %159 = vmatpush.msra.mxu0 %v101
    %160 = vmatpush.msra.mxu0 %v100
    %161 = vmatmul.f32.gmra.mxu0 %v134
    %v162 = vpop.f32.mrf.mxu0
    %v163 = vadd.f32 %v115, %v162
    %164 = vmatmul.f32.gmra.mxu0 %v137
    %v165 = vpop.f32.mrf.mxu0
    %v166 = vadd.f32 %v120, %v165
    %167 = vmatmul.f32.gmra.mxu0 %v140
    %v168 = vpop.f32.mrf.mxu0
    %v169 = vadd.f32 %v125, %v168
    %170 = vmatmul.f32.gmra.mxu0 %v143
    %v171 = vpop.f32.mrf.mxu0
    %v172 = vadd.f32 %v130, %v171
    %173 = vdwg.mxu0
    %v174 = vmax.f32 %v163, 0.0
    %v175 = vmax.f32 %v166, 0.0
    %v176 = vmax.f32 %v169, 0.0
    %v177 = vmax.f32 %v172, 0.0
    %v178 = vld [vmem:[%s5] sm:$0x1]
    %s179 = sld [smem:[#allocation2]]
    %v180 = vstv %s179
    %v182 = vsel %vm132, %v178, 0
    %184 = vmatpush.msra.mxu0 0.0
    %185 = vmatpush.msra.mxu0 0.0
    %186 = vmatpush.msra.mxu0 0.0
    %187 = vmatpush.msra.mxu0 0.0
    %188 = vmatpush.msra.mxu0 0.0
    %189 = vmatpush.msra.mxu0 0.0
    %190 = vmatpush.msra.mxu0 0.0
    %191 = vmatpush.msra.mxu0 0.0
    %192 = vmatpush.msra.mxu0 0.0
    %193 = vmatpush.msra.mxu0 0.0
    %194 = vmatpush.msra.mxu0 0.0
    %195 = vmatpush.msra.mxu0 0.0
    %196 = vmatpush.msra.mxu0 %v177
    %197 = vmatpush.msra.mxu0 %v176
    %198 = vmatpush.msra.mxu0 %v175
    %199 = vmatpush.msra.mxu0 %v174
    %200 = vmatmul.f32.gmra.mxu0 %v182
    %v201 = vpop.f32.mrf.mxu0
    %v202 = vadd.f32 %v180, %v201
    %203 = vdwg.mxu0
    %vm204 = vcmask 57344
    %205 = vst.msk [vmem:[#allocation3] sm:$0x1] %vm204, %v202
    // Predicated region
    $region30: #{tpu_custom_call.1} parent=1 // pred_check
      _
    $region31: #{tpu_custom_call.1} parent=1 // pred_check_branch
      %207 = sbr.rel (0) target = $region33
    $region32: #{tpu_custom_call.1} parent=1 // pred_region
      %209 = vsyncadd [#allocation4], 0
      %s211 = sshll.u32 [#allocation3], 4
      %s212 = int_to_ptr.vmem [resolvable:$true] %s211
      %s213 = sshll.u32 %s7, 4
      %s214 = int_to_ptr.hbm [resolvable:$true] %s213
      %216 = dma.vmem_to_hbm [thread:$0]  %s212, 16, %s214, [#allocation4]
    $region33: #{tpu_custom_call.1} parent=1 // pred_fallthru
      _
    // Predicated region
    $region34: #{tpu_custom_call.1} parent=1 // pred_check
      _
    $region35: #{tpu_custom_call.1} parent=1 // pred_check_branch
      %218 = sbr.rel (0) target = $region37
    $region36: #{tpu_custom_call.1} parent=1 // pred_region
      %220 = dma.done [#allocation4], 16
    $region37: #{tpu_custom_call.1} parent=1 // pred_fallthru
      _
    %221 = vsyncpa [#allocation4], 1

</llo_original>
